<compile_context>
chip_gen: v7x
topology: tpu7x:2x2x1
jax: 0.10.0
libtpu: 0.0.40
codegen_flags: <defaults>
</compile_context>

<pallas_src>
import functools

import jax
import jax.numpy as jnp
from jax.experimental import pallas as pl
from jax.experimental.pallas import tpu as pltpu


def _num_tensorcores():
    """Best-effort count of TensorCores a 'parallel' grid axis is sharded over."""
    try:
        kind = (jax.devices()[0].device_kind or "").lower()
    except Exception:
        return 1
    for tag in ("v7", "v5p", "v4"):
        if tag in kind:
            return 2
    return 1


def _fourier_kernel(x_ref, a_ref, b_ref, o_ref, *, k, reps):
    # x_ref: (TB, d)           batch tile of input rows
    # a_ref: (k, rows, L)      a, flattened (i,j)->i*d+j then reshaped; resident
    # b_ref: (k, rows, L)
    # o_ref: (TB, rows, L)     lane-dense output tile (L = 128 on the fast path)
    xv = x_ref[...]                                           # (TB, d)
    # One L-lane replication per batch row: x_rep[:, l] = x[:, l % d].
    x_rep = xv if reps == 1 else jnp.concatenate([xv] * reps, axis=-1)

    acc = None
    for m in range(k):                                        # k small & static
        ang = x_rep * jnp.float32(m + 1)                      # (TB, L)
        c = jnp.cos(ang)[:, None, :]                          # (TB, 1, L)
        s = jnp.sin(ang)[:, None, :]
        # Sublane/leading-dim broadcasts + elementwise FMA on the VPU.
        t = c * a_ref[m][None] + s * b_ref[m][None]           # (TB, rows, L)
        acc = t if acc is None else acc + t
    o_ref[...] = acc.astype(o_ref.dtype)


def kan_fourier_attention(x, a, b, *, tb=None):
    """x: (B, d) float32; a, b: (d, d, k) float32 -> (B, d, d) float32."""
    B, d = x.shape
    k = a.shape[-1]
    dd = d * d

    # Fast path: pack the flat (i,j) axis as (rows, 128) full vregs.
    if dd % 128 == 0 and 128 % d == 0:
        L = 128
    else:
        L = dd                      # fallback: single lane-dense row
    rows = dd // L
    reps = L // d

    # Wrapper-side layout plumbing: (d, d, k) -> (k, rows, L), flat p = i*d + j.
    a3 = jnp.transpose(a, (2, 0, 1)).reshape(k, rows, L)
    b3 = jnp.transpose(b, (2, 0, 1)).reshape(k, rows, L)

    # ---- batch tile selection --------------------------------------------
    if tb is None:
        out_row_bytes = dd * 4
        max_rows_fit = max(8, (4 << 20) // (2 * out_row_bytes))  # ~4 MiB dbl-buf
        tb = min(B, max_rows_fit)
        if tb >= 8:
            tb -= tb % 8                      # clean multiple of 8 sublanes
        n_tc = _num_tensorcores()
        if n_tc > 1:
            min_steps = 2 * n_tc              # >= 2 grid steps per core
            if B >= min_steps * 8:
                cap = ((pl.cdiv(B, min_steps) + 7) // 8) * 8
                tb = min(tb, cap)
    tb = max(1, min(tb, B))

    # Pad B up to a multiple of tb (no ragged / non-multiple-of-8 blocks).
    grid_b = pl.cdiv(B, tb)
    b_pad = grid_b * tb
    x_in = jnp.pad(x, ((0, b_pad - B), (0, 0))) if b_pad != B else x

    # ---- VMEM budget (includes in-kernel temporaries) ---------------------
    itemsize = 4
    need = itemsize * (
        2 * tb * d               # x tile, double-buffered
        + 4 * k * rows * L       # a + b, double-buffered, resident
        + 2 * tb * rows * L      # output tile, double-buffered
        + 2 * tb * rows * L      # per-term product / accumulator temporaries
        + 4 * tb * L             # x_rep / angle / cos / sin row temporaries
    ) + (2 << 20)
    vmem_limit = min(max(need, 16 * 1024 * 1024), 64 * 1024 * 1024)

    kernel = functools.partial(_fourier_kernel, k=k, reps=reps)

    out3 = pl.pallas_call(
        kernel,
        out_shape=jax.ShapeDtypeStruct((b_pad, rows, L), x.dtype),
        grid_spec=pltpu.PrefetchScalarGridSpec(
            num_scalar_prefetch=0,
            grid=(grid_b,),
            in_specs=[
                pl.BlockSpec((tb, d), lambda i: (i, 0)),            # x batch tile
                pl.BlockSpec((k, rows, L), lambda i: (0, 0, 0)),    # a (resident)
                pl.BlockSpec((k, rows, L), lambda i: (0, 0, 0)),    # b (resident)
            ],
            out_specs=pl.BlockSpec((tb, rows, L), lambda i: (i, 0, 0)),
        ),
        compiler_params=pltpu.CompilerParams(
            dimension_semantics=("parallel",),
            vmem_limit_bytes=vmem_limit,
        ),
    )(x_in, a3, b3)

    return out3[:B].reshape(B, d, d)


def reference(x, a, b):
    # Pure-JAX reference mirroring the PyTorch broadcasting exactly.
    k = a.shape[-1]
    m = jnp.arange(1, k + 1, dtype=x.dtype)                  # (k,)
    ang = x[..., None] * m                                   # (B, d, k)
    cos_part = jnp.cos(ang)[:, None, :, :] * a[None]         # (B, d, d, k)
    sin_part = jnp.sin(ang)[:, None, :, :] * b[None]         # (B, d, d, k)
    return cos_part.sum(-1) + sin_part.sum(-1)               # (B, d, d)


if __name__ == "__main__":
    d = 32
    key = jax.random.PRNGKey(0)
    kx, ka, kb, kx2, ka2, kb2 = jax.random.split(key, 6)

    # Module as specified: FourierFeature(dim, num_heads=4) -> default k=1.
    B = 8
    x = jax.random.normal(kx, (B, d), dtype=jnp.float32)
    a1 = jax.random.normal(ka, (d, d, 1), dtype=jnp.float32)
    b1 = jax.random.normal(kb, (d, d, 1), dtype=jnp.float32)
    out1 = jax.block_until_ready(kan_fourier_attention(x, a1, b1))
    ref1 = reference(x, a1, b1)
    assert out1.shape == (B, d, d)
    assert jnp.allclose(out1, ref1, atol=1e-4, rtol=1e-4), "mismatch vs reference (k=1)"

    # Robustness: k=2 (unrolled Fourier orders) and ragged batch (padded tail path).
    B2 = 10
    x2 = jax.random.normal(kx2, (B2, d), dtype=jnp.float32)
    a2 = jax.random.normal(ka2, (d, d, 2), dtype=jnp.float32)
    b2 = jax.random.normal(kb2, (d, d, 2), dtype=jnp.float32)
    out2 = jax.block_until_ready(kan_fourier_attention(x2, a2, b2))
    ref2 = reference(x2, a2, b2)
    assert out2.shape == (B2, d, d)
    assert jnp.allclose(out2, ref2, atol=1e-4, rtol=1e-4), "mismatch vs reference (k=2)"

    print("KERNEL_OK")
</pallas_src>

<mosaic_0001>
module attributes {stable_mosaic.version = 11 : i64} {
  func.func @_fourier_kernel(%arg0: i32, %arg1: memref<8x32xf32, #tpu.memory_space<vmem>>, %arg2: memref<1x8x128xf32, #tpu.memory_space<vmem>>, %arg3: memref<1x8x128xf32, #tpu.memory_space<vmem>>, %arg4: memref<8x8x128xf32, #tpu.memory_space<vmem>>) attributes {dimension_semantics = [#tpu.dimension_semantics<parallel>], iteration_bounds = array<i64: 1>, scalar_prefetch = 0 : i64, scratch_operands = 0 : i64, tpu.core_type = #tpu.core_type<tc>, window_params = [{transform_indices = @transform_0, window_bounds = array<i64: 8, 32>}, {pipeline_mode = #tpu.pipeline_mode<synchronous>, transform_indices = @transform_1, window_bounds = array<i64: 1, 8, 128>}, {pipeline_mode = #tpu.pipeline_mode<synchronous>, transform_indices = @transform_2, window_bounds = array<i64: 1, 8, 128>}, {transform_indices = @transform_3, window_bounds = array<i64: 8, 8, 128>}]} {
    %c0 = arith.constant 0 : index
    %c0_0 = arith.constant 0 : index
    %0 = vector.load %arg1[%c0, %c0_0] : memref<8x32xf32, #tpu.memory_space<vmem>>, vector<8x32xf32>
    %1 = tpu.concatenate %0, %0, %0, %0 in 1 : vector<8x32xf32>, vector<8x32xf32>, vector<8x32xf32>, vector<8x32xf32> -> vector<8x128xf32>
    %cst = arith.constant 1.000000e+00 : f32
    %2 = vector.broadcast %cst : f32 to vector<8x128xf32>
    %3 = arith.mulf %1, %2 : vector<8x128xf32>
    %4 = math.cos %3 : vector<8x128xf32>
    %5 = vector.shape_cast %4 : vector<8x128xf32> to vector<8x1x128xf32>
    %6 = math.sin %3 : vector<8x128xf32>
    %7 = vector.shape_cast %6 : vector<8x128xf32> to vector<8x1x128xf32>
    %c0_1 = arith.constant 0 : index
    %c0_2 = arith.constant 0 : index
    %c0_3 = arith.constant 0 : index
    %8 = vector.load %arg2[%c0_1, %c0_2, %c0_3] : memref<1x8x128xf32, #tpu.memory_space<vmem>>, vector<1x8x128xf32>
    %9 = vector.shape_cast %8 : vector<1x8x128xf32> to vector<8x128xf32>
    %10 = vector.shape_cast %9 : vector<8x128xf32> to vector<1x8x128xf32>
    %11 = vector.broadcast %5 : vector<8x1x128xf32> to vector<8x8x128xf32>
    %12 = vector.broadcast %10 : vector<1x8x128xf32> to vector<8x8x128xf32>
    %13 = arith.mulf %11, %12 : vector<8x8x128xf32>
    %c0_4 = arith.constant 0 : index
    %c0_5 = arith.constant 0 : index
    %c0_6 = arith.constant 0 : index
    %14 = vector.load %arg3[%c0_4, %c0_5, %c0_6] : memref<1x8x128xf32, #tpu.memory_space<vmem>>, vector<1x8x128xf32>
    %15 = vector.shape_cast %14 : vector<1x8x128xf32> to vector<8x128xf32>
    %16 = vector.shape_cast %15 : vector<8x128xf32> to vector<1x8x128xf32>
    %17 = vector.broadcast %7 : vector<8x1x128xf32> to vector<8x8x128xf32>
    %18 = vector.broadcast %16 : vector<1x8x128xf32> to vector<8x8x128xf32>
    %19 = arith.mulf %17, %18 : vector<8x8x128xf32>
    %20 = arith.addf %13, %19 : vector<8x8x128xf32>
    %c0_7 = arith.constant 0 : index
    %c0_8 = arith.constant 0 : index
    %c0_9 = arith.constant 0 : index
    %21 = vector.load %arg4[%c0_7, %c0_8, %c0_9] : memref<8x8x128xf32, #tpu.memory_space<vmem>>, vector<8x8x128xf32>
    tpu.vector_store %arg4[%c0_7, %c0_8, %c0_9], %20 {strides = array<i32>} : memref<8x8x128xf32, #tpu.memory_space<vmem>>, vector<8x8x128xf32>,
    return
  }
  func.func @transform_0(%arg0: i32) -> (i32, i32) {
    %c0_i32 = arith.constant 0 : i32
    %c0_i32_0 = arith.constant 0 : i32
    return %arg0, %c0_i32 : i32, i32
  }
  func.func @transform_1(%arg0: i32) -> (i32, i32, i32) {
    %c0_i32 = arith.constant 0 : i32
    %c0_i32_0 = arith.constant 0 : i32
    %c0_i32_1 = arith.constant 0 : i32
    %c0_i32_2 = arith.constant 0 : i32
    return %c0_i32, %c0_i32_0, %c0_i32_1 : i32, i32, i32
  }
  func.func @transform_2(%arg0: i32) -> (i32, i32, i32) {
    %c0_i32 = arith.constant 0 : i32
    %c0_i32_0 = arith.constant 0 : i32
    %c0_i32_1 = arith.constant 0 : i32
    %c0_i32_2 = arith.constant 0 : i32
    return %c0_i32, %c0_i32_0, %c0_i32_1 : i32, i32, i32
  }
  func.func @transform_3(%arg0: i32) -> (i32, i32, i32) {
    %c0_i32 = arith.constant 0 : i32
    %c0_i32_0 = arith.constant 0 : i32
    %c0_i32_1 = arith.constant 0 : i32
    return %arg0, %c0_i32, %c0_i32_0 : i32, i32, i32
  }
}

</mosaic_0001>

<llo_original>
// kernel: tpu_custom_call.1
$region0: #{tpu_custom_call.1}
  #allocation0 [shape = 'u32[]', space=smem, size = 0x4, offset = 0x4, fixed_abs, tag = 'smem constant byte address 0x4 - core index']
  #allocation1 [shape = 'u32[144,128]{1,0:T(1,128)}', space=vmem, size = 0x12000, scoped, tag = 'internal scratch']
  %s0 = inlined_call_operand.hbm [shape: f32[8,32], index: 0, kind: input, shape index: {}]
  %s1 = inlined_call_operand.hbm [shape: f32[1,8,128], index: 1, kind: input, shape index: {}]
  %s2 = inlined_call_operand.hbm [shape: f32[1,8,128], index: 2, kind: input, shape index: {}]
  %s3 = inlined_call_operand.hbm [shape: f32[8,8,128], index: 3, kind: output, shape index: {}]
  %s4 = sld [smem:[#allocation0]]
  $region34: #{tpu_custom_call.1} parent=0
    _
  %s6 = ssub.s32 1, %s4
  %s7 = scalar_select 0, %s6, %s4
  $region1: #{tpu_custom_call.1} parent=0
    #allocation2 [shape = 'u8[4096]{0}', space=vmem, size = 0x1000, scoped, tag = 'input window, operand 0, single buffered']
    #allocation3 [shape = 's32[1]{0}', space=sflag, size = 0x4, scoped, tag = 'scoped memory for tpu_custom_call.1']
    #allocation4 [shape = 's32[1]{0}', space=sflag, size = 0x4, scoped, tag = 'scoped memory for tpu_custom_call.1']
    #allocation5 [shape = 'u8[4096]{0}', space=vmem, size = 0x1000, scoped, tag = 'input window, operand 1, single buffered']
    #allocation6 [shape = 's32[1]{0}', space=sflag, size = 0x4, scoped, tag = 'scoped memory for tpu_custom_call.1']
    #allocation7 [shape = 'u8[4096]{0}', space=vmem, size = 0x1000, scoped, tag = 'input window, operand 2, single buffered']
    #allocation8 [shape = 'u8[32768]{0}', space=vmem, size = 0x8000, scoped, tag = 'output window, operand 0, single buffered']
    %8 = vsyncpa [#allocation3], 0
    %9 = vsyncpa [#allocation6], 0
    %10 = vsyncpa [#allocation4], 0
    // Predicated region
    $region2: #{tpu_custom_call.1} parent=1 // pred_check
      _
    $region3: #{tpu_custom_call.1} parent=1 // pred_check_branch
      %12 = sbr.rel (0) target = $region5
    $region4: #{tpu_custom_call.1} parent=1 // pred_region
      %s14 = ssub.s32 128, 128
      %15 = vsyncadd [#allocation3], %s14
      %s17 = sshll.u32 [#allocation2], 4
      %s18 = int_to_ptr.vmem [resolvable:$true] %s17
      %20 = dma.hbm_to_vmem [thread:$0]  %s0, 128, %s18, [#allocation3]
    $region5: #{tpu_custom_call.1} parent=1 // pred_fallthru
      _
    // Predicated region
    $region6: #{tpu_custom_call.1} parent=1 // pred_check
      _
    $region7: #{tpu_custom_call.1} parent=1 // pred_check_branch
      %22 = sbr.rel (0) target = $region9
    $region8: #{tpu_custom_call.1} parent=1 // pred_region
      %s24 = ssub.s32 128, 128
      %25 = vsyncadd [#allocation6], %s24
      %s27 = sshll.u32 [#allocation5], 4
      %s28 = int_to_ptr.vmem [resolvable:$true] %s27
      %30 = dma.hbm_to_vmem [thread:$0]  %s1, 128, %s28, [#allocation6]
    $region9: #{tpu_custom_call.1} parent=1 // pred_fallthru
      _
    // Predicated region
    $region10: #{tpu_custom_call.1} parent=1 // pred_check
      _
    $region11: #{tpu_custom_call.1} parent=1 // pred_check_branch
      %32 = sbr.rel (0) target = $region13
    $region12: #{tpu_custom_call.1} parent=1 // pred_region
      %s34 = ssub.s32 128, 128
      %35 = vsyncadd [#allocation6], %s34
      %s37 = sshll.u32 [#allocation7], 4
      %s38 = int_to_ptr.vmem [resolvable:$true] %s37
      %40 = dma.hbm_to_vmem [thread:$0]  %s2, 128, %s38, [#allocation6]
    $region13: #{tpu_custom_call.1} parent=1 // pred_fallthru
      _
    // Predicated region
    $region14: #{tpu_custom_call.1} parent=1 // pred_check
      _
    $region15: #{tpu_custom_call.1} parent=1 // pred_check_branch
      %42 = sbr.rel (0) target = $region17
    $region16: #{tpu_custom_call.1} parent=1 // pred_region
      %43 = dma.done [#allocation3], 128
    $region17: #{tpu_custom_call.1} parent=1 // pred_fallthru
      _
    // Predicated region
    $region18: #{tpu_custom_call.1} parent=1 // pred_check
      _
    $region19: #{tpu_custom_call.1} parent=1 // pred_check_branch
      %45 = sbr.rel (0) target = $region21
    $region20: #{tpu_custom_call.1} parent=1 // pred_region
      %46 = dma.done [#allocation6], 128
    $region21: #{tpu_custom_call.1} parent=1 // pred_fallthru
      _
    // Predicated region
    $region22: #{tpu_custom_call.1} parent=1 // pred_check
      _
    $region23: #{tpu_custom_call.1} parent=1 // pred_check_branch
      %48 = sbr.rel (0) target = $region25
    $region24: #{tpu_custom_call.1} parent=1 // pred_region
      %49 = dma.done [#allocation6], 128
    $region25: #{tpu_custom_call.1} parent=1 // pred_fallthru
      _
    %v50 = vld [vmem:[#allocation2] sm:$0xff]
    %52 = vrot.lane.b32.xlu0 %v50, 32
    %v53 = vpop.permute.xlu0 %52
    %55 = vrot.lane.b32.xlu0 %v50, 64
    %v56 = vpop.permute.xlu0 %55
    %58 = vrot.lane.b32.xlu0 %v50, 96
    %v59 = vpop.permute.xlu0 %58
    %vm61 = vcmask 261120
    %v62 = vsel %vm61, %v50, %v53
    %vm63 = vcmask 523264
    %v64 = vsel %vm63, %v62, %v56
    %vm65 = vcmask 785408
    %v66 = vsel %vm65, %v64, %v59
    %v67 = vand.u32 2147483647, %v66
    %vm68 = vcmp.le.f32.partialorder %v67, 0.7853982
    %vm69 = vcmp.lt.s32.totalorder %v66, 0
    %v70 = vand.u32 %v66, 2139095040
    %v71 = vshrl.u32 %v70, 23
    %v72 = vsub.s32 %v71, 127
    %v73 = vand.u32 2147483647, %v66
    %v74 = vand.u32 %v73, 8388607
    %v75 = vor.u32 %v74, 8388608
    %v76 = vsub.s32 0, %v75
    %v77 = vadd.s32 %v72, 1
    %vm78 = vcmp.gt.s32.totalorder %v77, 0
    %v79 = vsel %vm78, %v77, 0
    %v80 = vshrl.u32 %v79, 5
    %v81 = vand.u32 %v79, 31
    %v82 = vsub.s32 32, %v81
    %v83 = vshrl.u32 683565275, %v82
    %v84 = vshll.u32 683565275, %v81
    %v85 = vshrl.u32 2475754826, %v82
    %v86 = vor.u32 %v84, %v85
    %v87 = vshll.u32 2475754826, %v81
    %v88 = vshrl.u32 2131351028, %v82
    %v89 = vor.u32 %v87, %v88
    %v90 = vshll.u32 2131351028, %v81
    %v91 = vshrl.u32 2102212464, %v82
    %v92 = vor.u32 %v90, %v91
    %v93 = vshll.u32 2102212464, %v81
    %v94 = vshrl.u32 920167782, %v82
    %v95 = vor.u32 %v93, %v94
    %v96 = vshll.u32 920167782, %v81
    %v97 = vshrl.u32 1326507024, %v82
    %v98 = vor.u32 %v96, %v97
    %vm99 = vcmp.lt.s32.totalorder %v80, 1
    %vm100 = vcmp.lt.s32.totalorder %v80, 2
    %vm101 = vcmp.lt.s32.totalorder %v80, 3
    %vm102 = vcmp.lt.s32.totalorder %v80, 4
    %v103 = vsel %vm99, %v83, %v86
    %v104 = vsel %vm102, %v92, 2102212464
    %v105 = vsel %vm101, %v89, %v104
    %v106 = vsel %vm100, %v103, %v105
    %v107 = vsel %vm99, %v86, %v89
    %v108 = vsel %vm102, %v95, 920167782
    %v109 = vsel %vm101, %v92, %v108
    %v110 = vsel %vm100, %v107, %v109
    %v111 = vsel %vm99, %v89, %v92
    %v112 = vsel %vm102, %v98, 1326507024
    %v113 = vsel %vm101, %v95, %v112
    %v114 = vsel %vm100, %v111, %v113
    %v115 = vshll.u32 %v75, 8
    %v116 = vmul.u32.u64.compose %v115, %v114
    %v117 = vextract.low.u32 %v116
    %v118 = vextract.high.u32 %v116
    %v119 = vmul.u32.u64.compose %v115, %v110
    %v120 = vextract.low.u32 %v119
    %v121 = vextract.high.u32 %v119
    %v122 = vmul.u32 %v115, %v106
    %v123 = vadd.s32 %v118, %v120
    %vm124 = vc.u32 %v118, %v120
    %v125 = vadd.s32 %v121, 1
    %v126 = vsel %vm124, %v125, %v121
    %v127 = vadd.s32 %v122, %v126
    %v128 = vadd.s32 %v127, 536870912
    %v129 = vshrl.u32 %v128, 30
    %v130 = vshll.u32 %v129, 30
    %v131 = vsub.s32 %v127, %v130
    %vm132 = vcmp.lt.s32.totalorder %v131, 0
    %v133 = vsub.s32 0, %v131
    %v134 = vsel %vm132, %v133, %v131
    %v135 = vclz %v134
    %v136 = vsub.s32 %v135, 2
    %vm137 = vcmp.gt.s32.totalorder 0, %v136
    %v138 = vsel %vm137, 0, %v136
    %v139 = vsub.s32 32, %v138
    %v140 = vshll.u32 %v131, %v138
    %v141 = vshrl.u32 %v123, %v139
    %v142 = vor.u32 %v140, %v141
    %v143 = vsub.s32 4294967266, %v138
    %v144 = vadd.s32 %v143, 127
    %v145 = vshll.u32 %v144, 23
    %v146 = vor.u32 4788187, %v145
    %v147 = vand.u32 2147483647, %v146
    %v149 = vcvt.s32.f32 %v142
    %v150 = vmul.f32 %v149, %v147
    %v151 = vxor.u32 %v150, 2147483648
    %v152 = vsel %vm69, %v151, %v150
    %v153 = vsub.s32 4, %v129
    %v154 = vsel %vm69, %v153, %v129
    %v155 = vsel %vm68, %v66, %v152
    %v156 = vsel %vm68, 0, %v154
    %v157 = vcosq.f32.pop %v155
    %v158 = vsinq.f32.pop %v155
    %vm159 = vweird.f32 %v66
    %v160 = vand.u32 %v156, 3
    %vm161 = vcmp.lt.s32.totalorder %v160, 2
    %vm162 = vcmp.eq.s32.totalorder %v160, 0
    %v163 = vxor.u32 %v158, 2147483648
    %v164 = vsel %vm162, %v157, %v163
    %vm165 = vcmp.eq.s32.totalorder %v160, 2
    %v166 = vxor.u32 %v157, 2147483648
    %v167 = vsel %vm165, %v166, %v158
    %v168 = vsel %vm161, %v164, %v167
    %v169 = vsel %vm159, nan, %v168
    %v171 = vcombine.high %v169, %v169
    %v173 = vunpack.c.l.s4 1966171168
    %v174 = vunpack.c.0.s8 %v173
    %v175 = vlaneseq
    %v176 = vshrl.u32 %v175, 7
    %v177 = vsub.s32 %v174, %v176
    %v178 = vrot.slane %v169, %v177
    %v180 = vunpack.c.l.s4 1966171168
    %v181 = vunpack.c.0.s8 %v180
    %v182 = vlaneseq
    %v183 = vshrl.u32 %v182, 7
    %v184 = vsub.s32 %v181, %v183
    %v185 = vrot.slane %v171, %v184
    %v186 = vcombine.high %v178, %v178
    %v187 = vcombine.high %v185, %v185
    %v189 = vunpack.c.l.s4 1966171168
    %v190 = vunpack.c.0.s8 %v189
    %v191 = vlaneseq
    %v192 = vshrl.u32 %v191, 7
    %v193 = vsub.s32 %v190, %v192
    %v194 = vrot.slane %v178, %v193
    %v196 = vunpack.c.l.s4 1966171168
    %v197 = vunpack.c.0.s8 %v196
    %v198 = vlaneseq
    %v199 = vshrl.u32 %v198, 7
    %v200 = vsub.s32 %v197, %v199
    %v201 = vrot.slane %v185, %v200
    %v203 = vunpack.c.l.s4 1966171168
    %v204 = vunpack.c.0.s8 %v203
    %v205 = vlaneseq
    %v206 = vshrl.u32 %v205, 7
    %v207 = vsub.s32 %v204, %v206
    %v208 = vrot.slane %v186, %v207
    %v210 = vunpack.c.l.s4 1966171168
    %v211 = vunpack.c.0.s8 %v210
    %v212 = vlaneseq
    %v213 = vshrl.u32 %v212, 7
    %v214 = vsub.s32 %v211, %v213
    %v215 = vrot.slane %v187, %v214
    %v216 = vcombine.high %v194, %v194
    %v217 = vcombine.high %v201, %v201
    %v218 = vcombine.high %v208, %v208
    %v219 = vcombine.high %v215, %v215
    %v220 = vand.u32 2147483647, %v66
    %vm221 = vcmp.le.f32.partialorder %v220, 0.7853982
    %vm222 = vcmp.lt.s32.totalorder %v66, 0
    %v223 = vand.u32 %v66, 2139095040
    %v224 = vshrl.u32 %v223, 23
    %v225 = vsub.s32 %v224, 127
    %v226 = vand.u32 2147483647, %v66
    %v227 = vand.u32 %v226, 8388607
    %v228 = vor.u32 %v227, 8388608
    %v229 = vsub.s32 0, %v228
    %v230 = vadd.s32 %v225, 1
    %vm231 = vcmp.gt.s32.totalorder %v230, 0
    %v232 = vsel %vm231, %v230, 0
    %v233 = vshrl.u32 %v232, 5
    %v234 = vand.u32 %v232, 31
    %v235 = vsub.s32 32, %v234
    %v236 = vshrl.u32 683565275, %v235
    %v237 = vshll.u32 683565275, %v234
    %v238 = vshrl.u32 2475754826, %v235
    %v239 = vor.u32 %v237, %v238
    %v240 = vshll.u32 2475754826, %v234
    %v241 = vshrl.u32 2131351028, %v235
    %v242 = vor.u32 %v240, %v241
    %v243 = vshll.u32 2131351028, %v234
    %v244 = vshrl.u32 2102212464, %v235
    %v245 = vor.u32 %v243, %v244
    %v246 = vshll.u32 2102212464, %v234
    %v247 = vshrl.u32 920167782, %v235
    %v248 = vor.u32 %v246, %v247
    %v249 = vshll.u32 920167782, %v234
    %v250 = vshrl.u32 1326507024, %v235
    %v251 = vor.u32 %v249, %v250
    %vm252 = vcmp.lt.s32.totalorder %v233, 1
    %vm253 = vcmp.lt.s32.totalorder %v233, 2
    %vm254 = vcmp.lt.s32.totalorder %v233, 3
    %vm255 = vcmp.lt.s32.totalorder %v233, 4
    %v256 = vsel %vm252, %v236, %v239
    %v257 = vsel %vm255, %v245, 2102212464
    %v258 = vsel %vm254, %v242, %v257
    %v259 = vsel %vm253, %v256, %v258
    %v260 = vsel %vm252, %v239, %v242
    %v261 = vsel %vm255, %v248, 920167782
    %v262 = vsel %vm254, %v245, %v261
    %v263 = vsel %vm253, %v260, %v262
    %v264 = vsel %vm252, %v242, %v245
    %v265 = vsel %vm255, %v251, 1326507024
    %v266 = vsel %vm254, %v248, %v265
    %v267 = vsel %vm253, %v264, %v266
    %v268 = vshll.u32 %v228, 8
    %v269 = vmul.u32.u64.compose %v268, %v267
    %v270 = vextract.low.u32 %v269
    %v271 = vextract.high.u32 %v269
    %v272 = vmul.u32.u64.compose %v268, %v263
    %v273 = vextract.low.u32 %v272
    %v274 = vextract.high.u32 %v272
    %v275 = vmul.u32 %v268, %v259
    %v276 = vadd.s32 %v271, %v273
    %vm277 = vc.u32 %v271, %v273
    %v278 = vadd.s32 %v274, 1
    %v279 = vsel %vm277, %v278, %v274
    %v280 = vadd.s32 %v275, %v279
    %v281 = vadd.s32 %v280, 536870912
    %v282 = vshrl.u32 %v281, 30
    %v283 = vshll.u32 %v282, 30
    %v284 = vsub.s32 %v280, %v283
    %vm285 = vcmp.lt.s32.totalorder %v284, 0
    %v286 = vsub.s32 0, %v284
    %v287 = vsel %vm285, %v286, %v284
    %v288 = vclz %v287
    %v289 = vsub.s32 %v288, 2
    %vm290 = vcmp.gt.s32.totalorder 0, %v289
    %v291 = vsel %vm290, 0, %v289
    %v292 = vsub.s32 32, %v291
    %v293 = vshll.u32 %v284, %v291
    %v294 = vshrl.u32 %v276, %v292
    %v295 = vor.u32 %v293, %v294
    %v296 = vsub.s32 4294967266, %v291
    %v297 = vadd.s32 %v296, 127
    %v298 = vshll.u32 %v297, 23
    %v299 = vor.u32 4788187, %v298
    %v300 = vand.u32 2147483647, %v299
    %v302 = vcvt.s32.f32 %v295
    %v303 = vmul.f32 %v302, %v300
    %v304 = vxor.u32 %v303, 2147483648
    %v305 = vsel %vm222, %v304, %v303
    %v306 = vsub.s32 4, %v282
    %v307 = vsel %vm222, %v306, %v282
    %v308 = vsel %vm221, %v66, %v305
    %v309 = vsel %vm221, 0, %v307
    %v310 = vcosq.f32.pop %v308
    %v311 = vsinq.f32.pop %v308
    %vm312 = vweird.f32 %v66
    %v313 = vadd.s32 %v309, 3
    %v314 = vand.u32 %v313, 3
    %vm315 = vcmp.lt.s32.totalorder %v314, 2
    %vm316 = vcmp.eq.s32.totalorder %v314, 0
    %v317 = vxor.u32 %v311, 2147483648
    %v318 = vsel %vm316, %v310, %v317
    %vm319 = vcmp.eq.s32.totalorder %v314, 2
    %v320 = vxor.u32 %v310, 2147483648
    %v321 = vsel %vm319, %v320, %v311
    %v322 = vsel %vm315, %v318, %v321
    %v323 = vsel %vm312, nan, %v322
    %v325 = vcombine.high %v323, %v323
    %v327 = vunpack.c.l.s4 1966171168
    %v328 = vunpack.c.0.s8 %v327
    %v329 = vlaneseq
    %v330 = vshrl.u32 %v329, 7
    %v331 = vsub.s32 %v328, %v330
    %v332 = vrot.slane %v323, %v331
    %v334 = vunpack.c.l.s4 1966171168
    %v335 = vunpack.c.0.s8 %v334
    %v336 = vlaneseq
    %v337 = vshrl.u32 %v336, 7
    %v338 = vsub.s32 %v335, %v337
    %v339 = vrot.slane %v325, %v338
    %v340 = vcombine.high %v332, %v332
    %v341 = vcombine.high %v339, %v339
    %v343 = vunpack.c.l.s4 1966171168
    %v344 = vunpack.c.0.s8 %v343
    %v345 = vlaneseq
    %v346 = vshrl.u32 %v345, 7
    %v347 = vsub.s32 %v344, %v346
    %v348 = vrot.slane %v332, %v347
    %v350 = vunpack.c.l.s4 1966171168
    %v351 = vunpack.c.0.s8 %v350
    %v352 = vlaneseq
    %v353 = vshrl.u32 %v352, 7
    %v354 = vsub.s32 %v351, %v353
    %v355 = vrot.slane %v339, %v354
    %v357 = vunpack.c.l.s4 1966171168
    %v358 = vunpack.c.0.s8 %v357
    %v359 = vlaneseq
    %v360 = vshrl.u32 %v359, 7
    %v361 = vsub.s32 %v358, %v360
    %v362 = vrot.slane %v340, %v361
    %v364 = vunpack.c.l.s4 1966171168
    %v365 = vunpack.c.0.s8 %v364
    %v366 = vlaneseq
    %v367 = vshrl.u32 %v366, 7
    %v368 = vsub.s32 %v365, %v367
    %v369 = vrot.slane %v341, %v368
    %v370 = vcombine.high %v348, %v348
    %v371 = vcombine.high %v355, %v355
    %v372 = vcombine.high %v362, %v362
    %v373 = vcombine.high %v369, %v369
    %v374 = vld [vmem:[#allocation5] sm:$0xff]
    %v375 = vlaneseq
    %v376 = vshrl.u32 %v375, 7
    %v377 = vsub.s32 0, %v376
    %v378 = vrot.slane %v194, %v377
    %v379 = vlaneseq
    %v380 = vshrl.u32 %v379, 7
    %v381 = vsub.s32 0, %v380
    %v382 = vrot.slane %v208, %v381
    %v383 = vlaneseq
    %v384 = vshrl.u32 %v383, 7
    %v385 = vsub.s32 0, %v384
    %v386 = vrot.slane %v216, %v385
    %v387 = vlaneseq
    %v388 = vshrl.u32 %v387, 7
    %v389 = vsub.s32 0, %v388
    %v390 = vrot.slane %v218, %v389
    %v391 = vlaneseq
    %v392 = vshrl.u32 %v391, 7
    %v393 = vsub.s32 0, %v392
    %v394 = vrot.slane %v201, %v393
    %v395 = vlaneseq
    %v396 = vshrl.u32 %v395, 7
    %v397 = vsub.s32 0, %v396
    %v398 = vrot.slane %v215, %v397
    %v399 = vlaneseq
    %v400 = vshrl.u32 %v399, 7
    %v401 = vsub.s32 0, %v400
    %v402 = vrot.slane %v217, %v401
    %v403 = vlaneseq
    %v404 = vshrl.u32 %v403, 7
    %v405 = vsub.s32 0, %v404
    %v406 = vrot.slane %v219, %v405
    %v415 = vmul.f32 %v378, %v374
    %v416 = vmul.f32 %v382, %v374
    %v417 = vmul.f32 %v386, %v374
    %v418 = vmul.f32 %v390, %v374
    %v419 = vmul.f32 %v394, %v374
    %v420 = vmul.f32 %v398, %v374
    %v421 = vmul.f32 %v402, %v374
    %v422 = vmul.f32 %v406, %v374
    %v423 = vld [vmem:[#allocation7] sm:$0xff]
    %v424 = vlaneseq
    %v425 = vshrl.u32 %v424, 7
    %v426 = vsub.s32 0, %v425
    %v427 = vrot.slane %v348, %v426
    %v428 = vlaneseq
    %v429 = vshrl.u32 %v428, 7
    %v430 = vsub.s32 0, %v429
    %v431 = vrot.slane %v362, %v430
    %v432 = vlaneseq
    %v433 = vshrl.u32 %v432, 7
    %v434 = vsub.s32 0, %v433
    %v435 = vrot.slane %v370, %v434
    %v436 = vlaneseq
    %v437 = vshrl.u32 %v436, 7
    %v438 = vsub.s32 0, %v437
    %v439 = vrot.slane %v372, %v438
    %v440 = vlaneseq
    %v441 = vshrl.u32 %v440, 7
    %v442 = vsub.s32 0, %v441
    %v443 = vrot.slane %v355, %v442
    %v444 = vlaneseq
    %v445 = vshrl.u32 %v444, 7
    %v446 = vsub.s32 0, %v445
    %v447 = vrot.slane %v369, %v446
    %v448 = vlaneseq
    %v449 = vshrl.u32 %v448, 7
    %v450 = vsub.s32 0, %v449
    %v451 = vrot.slane %v371, %v450
    %v452 = vlaneseq
    %v453 = vshrl.u32 %v452, 7
    %v454 = vsub.s32 0, %v453
    %v455 = vrot.slane %v373, %v454
    %v464 = vmul.f32 %v427, %v423
    %v465 = vmul.f32 %v431, %v423
    %v466 = vmul.f32 %v435, %v423
    %v467 = vmul.f32 %v439, %v423
    %v468 = vmul.f32 %v443, %v423
    %v469 = vmul.f32 %v447, %v423
    %v470 = vmul.f32 %v451, %v423
    %v471 = vmul.f32 %v455, %v423
    %v472 = vadd.f32 %v415, %v464
    %v473 = vadd.f32 %v416, %v465
    %v474 = vadd.f32 %v417, %v466
    %v475 = vadd.f32 %v418, %v467
    %v476 = vadd.f32 %v419, %v468
    %v477 = vadd.f32 %v420, %v469
    %v478 = vadd.f32 %v421, %v470
    %v479 = vadd.f32 %v422, %v471
    %480 = vst [vmem:[#allocation8] sm:$0xff] %v472
    %481 = vst [vmem:[#allocation8 + $0x8] sm:$0xff] %v473
    %482 = vst [vmem:[#allocation8 + $0x10] sm:$0xff] %v474
    %483 = vst [vmem:[#allocation8 + $0x18] sm:$0xff] %v475
    %484 = vst [vmem:[#allocation8 + $0x20] sm:$0xff] %v476
    %485 = vst [vmem:[#allocation8 + $0x28] sm:$0xff] %v477
    %486 = vst [vmem:[#allocation8 + $0x30] sm:$0xff] %v478
    %487 = vst [vmem:[#allocation8 + $0x38] sm:$0xff] %v479
    // Predicated region
    $region26: #{tpu_custom_call.1} parent=1 // pred_check
      _
    $region27: #{tpu_custom_call.1} parent=1 // pred_check_branch
      %489 = sbr.rel (0) target = $region29
    $region28: #{tpu_custom_call.1} parent=1 // pred_region
      %s491 = ssub.s32 1024, 1024
      %492 = vsyncadd [#allocation4], %s491
      %s493 = sshll.u32 [#allocation8], 4
      %s494 = int_to_ptr.vmem [resolvable:$true] %s493
      %499 = dma.vmem_to_hbm [thread:$0]  %s494, 1024, %s3, [#allocation4], 128, 128, 8
    $region29: #{tpu_custom_call.1} parent=1 // pred_fallthru
      _
    // Predicated region
    $region30: #{tpu_custom_call.1} parent=1 // pred_check
      _
    $region31: #{tpu_custom_call.1} parent=1 // pred_check_branch
      %501 = sbr.rel (0) target = $region33
    $region32: #{tpu_custom_call.1} parent=1 // pred_region
      %502 = dma.done [#allocation4], 1024
    $region33: #{tpu_custom_call.1} parent=1 // pred_fallthru
      _
    %503 = vsyncpa [#allocation3], 1
    %504 = vsyncpa [#allocation6], 1
    %505 = vsyncpa [#allocation4], 1

</llo_original>
